<compile_context>
chip_gen: v6e
topology: v6e:2x2x1
jax: 0.10.0
libtpu: 0.0.40
codegen_flags: <defaults>
</compile_context>

<pallas_src>
import functools
import math

import jax
import jax.numpy as jnp
from jax.experimental import pallas as pl
from jax.experimental.pallas import tpu as pltpu


def _round_up(x: int, m: int) -> int:
    return ((x + m - 1) // m) * m


def _tanh_normal_kernel(
    xt_ref,      # [Din, TB]   activation tile, batch on lanes (pipelined)
    wbt_ref,     # [H, Din]    base linear weight^T          (VMEM-resident)
    bbt_ref,     # [H, 1]      base linear bias               (VMEM-resident)
    wcatt_ref,   # [2A, H]     fused [mean ; log_std] head weight^T (resident)
    bcatt_ref,   # [2A, 1]     fused head bias                      (resident)
    out_ref,     # [2A, TB]    rows [0,A)=means, [A,2A)=stds; lane-dense store
    *,
    action_dim: int,
    log_std_min: float,
    log_std_max: float,
):
    xt = xt_ref[...]                                           # [Din, TB]

    # base_cls: Linear + ReLU (MXU matmul, f32 accumulate; bias/relu in f32).
    h = jnp.dot(wbt_ref[...], xt, preferred_element_type=jnp.float32)
    h = jnp.maximum(h + bbt_ref[...], 0.0)                     # [H, TB] f32

    # Fused heads: one matmul produces [means ; log_stds] stacked on sublanes.
    y = jnp.dot(wcatt_ref[...], h.astype(wcatt_ref.dtype),
                preferred_element_type=jnp.float32)
    y = y + bcatt_ref[...]                                     # [2A, TB] f32

    # clamp + exp on the whole slab, select per-row: mean rows keep the raw
    # linear output, std rows take exp(clip(.)). clip bounds exp so boundary
    # garbage lanes stay finite. (If A ever reaches >=128 sublanes, split the
    # slab and run exp only on the std half to halve EUP pushes.)
    row = jax.lax.broadcasted_iota(jnp.int32, y.shape, dimension=0)
    stds = jnp.exp(jnp.clip(y, log_std_min, log_std_max))
    out = jnp.where(row >= action_dim, stds, y)

    # Single lane-dense [2A, TB] store (last dim = TB, a multiple of 128).
    out_ref[...] = out.astype(out_ref.dtype)


def prepare_params(params, *, matmul_dtype=jnp.float32):
    """Build fused + transposed weights ONCE (hoisted out of the forward).

    params: dict with wb [Din,H], bb [1,H], wm [H,A], bm [1,A], wl [H,A], bl [1,A]
    matmul_dtype: jnp.bfloat16 halves HBM/VMEM traffic on v5e/v6e (accumulation
                  stays f32 in-kernel); default f32 keeps exact numerics.
    """
    A = params["wm"].shape[1]
    return {
        "wbt": params["wb"].T.astype(matmul_dtype),                       # [H, Din]
        "bbt": params["bb"].reshape(-1, 1).astype(jnp.float32),           # [H, 1]
        "wcatt": jnp.concatenate(
            [params["wm"].T, params["wl"].T], axis=0).astype(matmul_dtype),  # [2A, H]
        "bcatt": jnp.concatenate(
            [params["bm"].reshape(-1, 1), params["bl"].reshape(-1, 1)],
            axis=0).astype(jnp.float32),                                  # [2A, 1]
        "action_dim": A,
    }


def tanh_normal_forward(x, fused, *, log_std_min=-20.0, log_std_max=2.0,
                        block_b=512, min_grid_steps=2):
    """Returns (means, stds) of shape [B, A] parameterizing the Normal.

    x: [B, Din] float32. fused: output of prepare_params().
    """
    B, Din = x.shape
    H = fused["wbt"].shape[0]
    A = int(fused["action_dim"])
    two_a = 2 * A

    # Batch-on-lanes: the kernel consumes x as [Din, B]. Callers that already
    # keep activations transposed can skip this boundary transpose.
    xt = x.T.astype(fused["wbt"].dtype)                                   # [Din, B]

    # Batch tile on the lane axis (multiple of 128). Keep >= min_grid_steps
    # grid steps when the batch allows it so ("parallel",) can shard the batch
    # across both v7x TensorCores; no host-side padding (Pallas boundary block).
    TB = max(128, min(block_b,
                      _round_up(max(B // max(min_grid_steps, 1), 1), 128)))
    nb = pl.cdiv(B, TB)

    kernel = functools.partial(
        _tanh_normal_kernel,
        action_dim=A,
        log_std_min=float(log_std_min),
        log_std_max=float(log_std_max),
    )

    out_t = pl.pallas_call(
        kernel,
        out_shape=jax.ShapeDtypeStruct((two_a, B), jnp.float32),
        grid=(nb,),
        in_specs=[
            # x tile walks the batch (lane) axis: pipelined DMA per grid step.
            pl.BlockSpec((Din, TB), lambda i: (0, i)),
            # Weights / biases: constant index_map -> DMA'd once, VMEM-resident
            # across all grid steps.
            pl.BlockSpec((H, Din), lambda i: (0, 0)),
            pl.BlockSpec((H, 1), lambda i: (0, 0)),
            pl.BlockSpec((two_a, H), lambda i: (0, 0)),
            pl.BlockSpec((two_a, 1), lambda i: (0, 0)),
        ],
        out_specs=pl.BlockSpec((two_a, TB), lambda i: (0, i)),
        compiler_params=pltpu.CompilerParams(
            dimension_semantics=("parallel",),
            # Plenty for TB up to 2048 at these dims; re-derive for production
            # Din/H on v7x (64 MiB physical VMEM).
            vmem_limit_bytes=32 * 1024 * 1024,
        ),
    )(xt, fused["wbt"], fused["bbt"], fused["wcatt"], fused["bcatt"])

    # Un-transpose for module-equivalent [B, A] outputs (callers on the hot
    # path can instead consume the [2A, B] slab directly).
    means = out_t[:A, :].T
    stds = out_t[A:, :].T
    return means, stds


def xavier_uniform(key, fan_in, fan_out, dtype=jnp.float32):
    # Matches nn.init.xavier_uniform_ with gain=1.
    limit = math.sqrt(6.0 / (fan_in + fan_out))
    return jax.random.uniform(
        key, (fan_in, fan_out), dtype=dtype, minval=-limit, maxval=limit)


def init_params(key, input_dim, base_output_dim, action_dim):
    k0, k1, k2 = jax.random.split(key, 3)
    return {
        # base_cls: deterministic synthetic Linear (xavier) + zero bias
        "wb": xavier_uniform(k0, input_dim, base_output_dim),
        "bb": jnp.zeros((1, base_output_dim), jnp.float32),
        # mean head: xavier_uniform_, zero bias (as in __init__)
        "wm": xavier_uniform(k1, base_output_dim, action_dim),
        "bm": jnp.zeros((1, action_dim), jnp.float32),
        # log_std head: xavier_uniform_, zero bias (as in __init__)
        "wl": xavier_uniform(k2, base_output_dim, action_dim),
        "bl": jnp.zeros((1, action_dim), jnp.float32),
    }


if __name__ == "__main__":
    # Small shapes consistent with the module. B=256 -> two 128-lane batch
    # tiles (exercises the grid and megacore sharding).
    B, DIN, H, A = 256, 32, 32, 8
    key = jax.random.PRNGKey(0)
    kx, kp = jax.random.split(key)

    x = jax.random.normal(kx, (B, DIN), dtype=jnp.float32)
    params = init_params(kp, DIN, H, A)
    fused = prepare_params(params)   # built once, reused across forward calls

    means, stds = tanh_normal_forward(x, fused, log_std_min=-20.0, log_std_max=2.0)
    jax.block_until_ready((means, stds))

    # Reference check in plain JAX.
    h_ref = jnp.maximum(x @ params["wb"] + params["bb"], 0.0)
    means_ref = h_ref @ params["wm"] + params["bm"]
    stds_ref = jnp.exp(jnp.clip(h_ref @ params["wl"] + params["bl"], -20.0, 2.0))
    assert means.shape == (B, A) and stds.shape == (B, A)
    assert jnp.allclose(means, means_ref, atol=1e-5, rtol=1e-5)
    assert jnp.allclose(stds, stds_ref, atol=1e-5, rtol=1e-5)

    # TODO(synk): returning a torch.distributions.Normal / TanhDiagNormal object
    # (and the tanh squash of samples when squash_tanh=True) has no Pallas
    # equivalent; the kernel emits the (means, stds) parameters. With
    # squash_tanh=True the distribution mode would additionally be tanh(means).
    print("KERNEL_OK")
</pallas_src>

<mosaic_0001>
module attributes {stable_mosaic.version = 11 : i64} {
  func.func @_tanh_normal_kernel(%arg0: i32, %arg1: memref<32x128xf32, #tpu.memory_space<vmem>>, %arg2: memref<32x32xf32, #tpu.memory_space<vmem>>, %arg3: memref<32x1xf32, #tpu.memory_space<vmem>>, %arg4: memref<16x32xf32, #tpu.memory_space<vmem>>, %arg5: memref<16x1xf32, #tpu.memory_space<vmem>>, %arg6: memref<16x128xf32, #tpu.memory_space<vmem>>) attributes {dimension_semantics = [#tpu.dimension_semantics<parallel>], iteration_bounds = array<i64: 2>, scalar_prefetch = 0 : i64, scratch_operands = 0 : i64, tpu.core_type = #tpu.core_type<tc>, window_params = [{transform_indices = @transform_0, window_bounds = array<i64: 32, 128>}, {pipeline_mode = #tpu.pipeline_mode<synchronous>, transform_indices = @transform_1, window_bounds = array<i64: 32, 32>}, {pipeline_mode = #tpu.pipeline_mode<synchronous>, transform_indices = @transform_2, window_bounds = array<i64: 32, 1>}, {pipeline_mode = #tpu.pipeline_mode<synchronous>, transform_indices = @transform_3, window_bounds = array<i64: 16, 32>}, {pipeline_mode = #tpu.pipeline_mode<synchronous>, transform_indices = @transform_4, window_bounds = array<i64: 16, 1>}, {transform_indices = @transform_5, window_bounds = array<i64: 16, 128>}]} {
    %c0 = arith.constant 0 : index
    %c0_0 = arith.constant 0 : index
    %0 = vector.load %arg1[%c0, %c0_0] : memref<32x128xf32, #tpu.memory_space<vmem>>, vector<32x128xf32>
    %c0_1 = arith.constant 0 : index
    %c0_2 = arith.constant 0 : index
    %1 = vector.load %arg2[%c0_1, %c0_2] : memref<32x32xf32, #tpu.memory_space<vmem>>, vector<32x32xf32>
    %cst = arith.constant dense<0.000000e+00> : vector<32x128xf32>
    %2 = tpu.matmul %1, %0, %cst {dimension_numbers = #tpu.dot_dimension_numbers<[1], [0], [0], [1], [0, 0, 1, 1], [], []>} : vector<32x32xf32>, vector<32x128xf32>, vector<32x128xf32> -> vector<32x128xf32>
    %c0_3 = arith.constant 0 : index
    %c0_4 = arith.constant 0 : index
    %3 = vector.load %arg3[%c0_3, %c0_4] : memref<32x1xf32, #tpu.memory_space<vmem>>, vector<32x1xf32>
    %4 = vector.broadcast %3 : vector<32x1xf32> to vector<32x128xf32>
    %5 = arith.addf %2, %4 : vector<32x128xf32>
    %cst_5 = arith.constant 0.000000e+00 : f32
    %6 = vector.broadcast %cst_5 : f32 to vector<32x128xf32>
    %7 = arith.maximumf %5, %6 : vector<32x128xf32>
    %c0_6 = arith.constant 0 : index
    %c0_7 = arith.constant 0 : index
    %8 = vector.load %arg4[%c0_6, %c0_7] : memref<16x32xf32, #tpu.memory_space<vmem>>, vector<16x32xf32>
    %cst_8 = arith.constant dense<0.000000e+00> : vector<16x128xf32>
    %9 = tpu.matmul %8, %7, %cst_8 {dimension_numbers = #tpu.dot_dimension_numbers<[1], [0], [0], [1], [0, 0, 1, 1], [], []>} : vector<16x32xf32>, vector<32x128xf32>, vector<16x128xf32> -> vector<16x128xf32>
    %c0_9 = arith.constant 0 : index
    %c0_10 = arith.constant 0 : index
    %10 = vector.load %arg5[%c0_9, %c0_10] : memref<16x1xf32, #tpu.memory_space<vmem>>, vector<16x1xf32>
    %11 = vector.broadcast %10 : vector<16x1xf32> to vector<16x128xf32>
    %12 = arith.addf %9, %11 : vector<16x128xf32>
    %13 = tpu.iota {dimensions = array<i32: 0>} : vector<16x128xi32>
    %cst_11 = arith.constant -2.000000e+01 : f32
    %cst_12 = arith.constant 2.000000e+00 : f32
    %14 = vector.broadcast %cst_11 : f32 to vector<16x128xf32>
    %15 = arith.maximumf %14, %12 : vector<16x128xf32>
    %16 = vector.broadcast %cst_12 : f32 to vector<16x128xf32>
    %17 = arith.minimumf %16, %15 : vector<16x128xf32>
    %18 = math.exp %17 : vector<16x128xf32>
    %c8_i32 = arith.constant 8 : i32
    %19 = vector.broadcast %c8_i32 : i32 to vector<16x128xi32>
    %20 = arith.cmpi sge, %13, %19 : vector<16x128xi32>
    %21 = arith.select %20, %18, %12 : vector<16x128xi1>, vector<16x128xf32>
    %c0_13 = arith.constant 0 : index
    %c0_14 = arith.constant 0 : index
    %22 = vector.load %arg6[%c0_13, %c0_14] : memref<16x128xf32, #tpu.memory_space<vmem>>, vector<16x128xf32>
    tpu.vector_store %arg6[%c0_13, %c0_14], %21 {strides = array<i32>} : memref<16x128xf32, #tpu.memory_space<vmem>>, vector<16x128xf32>,
    return
  }
  func.func @transform_0(%arg0: i32) -> (i32, i32) {
    %c0_i32 = arith.constant 0 : i32
    %c0_i32_0 = arith.constant 0 : i32
    return %c0_i32, %arg0 : i32, i32
  }
  func.func @transform_1(%arg0: i32) -> (i32, i32) {
    %c0_i32 = arith.constant 0 : i32
    %c0_i32_0 = arith.constant 0 : i32
    %c0_i32_1 = arith.constant 0 : i32
    return %c0_i32, %c0_i32_0 : i32, i32
  }
  func.func @transform_2(%arg0: i32) -> (i32, i32) {
    %c0_i32 = arith.constant 0 : i32
    %c0_i32_0 = arith.constant 0 : i32
    %c0_i32_1 = arith.constant 0 : i32
    return %c0_i32, %c0_i32_0 : i32, i32
  }
  func.func @transform_3(%arg0: i32) -> (i32, i32) {
    %c0_i32 = arith.constant 0 : i32
    %c0_i32_0 = arith.constant 0 : i32
    %c0_i32_1 = arith.constant 0 : i32
    return %c0_i32, %c0_i32_0 : i32, i32
  }
  func.func @transform_4(%arg0: i32) -> (i32, i32) {
    %c0_i32 = arith.constant 0 : i32
    %c0_i32_0 = arith.constant 0 : i32
    %c0_i32_1 = arith.constant 0 : i32
    return %c0_i32, %c0_i32_0 : i32, i32
  }
  func.func @transform_5(%arg0: i32) -> (i32, i32) {
    %c0_i32 = arith.constant 0 : i32
    %c0_i32_0 = arith.constant 0 : i32
    return %c0_i32, %arg0 : i32, i32
  }
}

</mosaic_0001>

<llo_original>
// kernel: tpu_custom_call.1
$region0: #{tpu_custom_call.1}
  #allocation0 [shape = 'u32[]', space=smem, size = 0x4, offset = 0x4, fixed_abs, tag = 'smem constant byte address 0x4 - core index']
  #allocation1 [shape = 'u32[144,128]{1,0:T(1,128)}', space=vmem, size = 0x12000, scoped, tag = 'internal scratch']
  %s0 = inlined_call_operand.hbm [shape: f32[32,256], index: 0, kind: input, shape index: {}]
  %s1 = inlined_call_operand.vmem [shape: f32[32,32], index: 1, kind: input, shape index: {}]
  %s2 = inlined_call_operand.vmem [shape: f32[32,1], index: 2, kind: input, shape index: {}]
  %s3 = inlined_call_operand.vmem [shape: f32[16,32], index: 3, kind: input, shape index: {}]
  %s4 = inlined_call_operand.vmem [shape: f32[16,1], index: 4, kind: input, shape index: {}]
  %s5 = inlined_call_operand.hbm [shape: f32[16,256], index: 5, kind: output, shape index: {}]
  %s6 = sld [smem:[#allocation0]]
  $region57: #{tpu_custom_call.1} parent=0
    _
  %s8 = ssub.s32 1, %s6
  %s9 = scalar_select 0, %s8, %s6
  $region1: #{tpu_custom_call.1} parent=0
    #allocation2 [shape = 'u8[32768]{0}', space=vmem, size = 0x8000, scoped, tag = 'input window, operand 0']
    #allocation3 [shape = 's32[2]{0}', space=sflag, size = 0x8, scoped, tag = 'scoped memory for tpu_custom_call.1']
    #allocation4 [shape = 's32[2]{0}', space=sflag, size = 0x8, scoped, tag = 'scoped memory for tpu_custom_call.1']
    #allocation5 [shape = 'u8[16384]{0}', space=vmem, size = 0x4000, scoped, tag = 'output window, operand 0']
    %10 = vsyncpa [#allocation3], 0
    %s11 = scalar_lea.sflag [#allocation3], 1
    %12 = vsyncpa %s11, 0
    %13 = vsyncpa [#allocation4], 0
    %s14 = scalar_lea.sflag [#allocation4], 1
    %15 = vsyncpa %s14, 0
    loop: start=0, step=1, limit=4
    $region2: #{tpu_custom_call.1} parent=1 // loop_pre_header
      _
    $region3: #{tpu_custom_call.1} parent=1 // loop_header
      %s17 = sphi 0, %s21
      %p18 = scmp.ge.s32.totalorder %s17, 4
      %s27 = sphi 0, %s29
      %s30 = sphi 0, %s27
      %s31 = sphi 0, %s30
      %s47 = sphi 0, %s31
      %s51 = sphi 0, %s51
      %s53 = sphi 0, %s51
      %s54 = sphi 0, %s53
      %s68 = sphi 0, %s54
      %s72 = sphi 0, %s72
      %s74 = sphi 0, %s72
      %s75 = sphi 0, %s74
      %s89 = sphi 0, %s75
      %s93 = sphi 0, %s93
      %s95 = sphi 0, %s93
      %s96 = sphi 0, %s95
      %s110 = sphi 0, %s96
      %s114 = sphi 0, %s114
      %s116 = sphi 0, %s114
      %s117 = sphi 0, %s116
      %s131 = sphi 0, %s117
      %s137 = sphi 0, %s139
      %s140 = sphi 0, %s137
      %s141 = sphi 0, %s140
      %s157 = sphi 0, %s141
    $region4: #{tpu_custom_call.1} parent=1 // loop_header_branch
      %20 = sbr.rel (%p18) target = $region8
    $region5: #{tpu_custom_call.1} parent=1 // loop_body
      %s22 = ssub.s32 %s17, 1
      %s23 = ssub.s32 %s17, 2
      %s24 = sadd.s32 %s17, 1
      %s25 = ssub.s32 %s17, %s24
      %p26 = scmp.eq.s32.totalorder %s25, 0
      %s28 = sadd.s32 %s27, 1
      %s29 = scalar_select %p26, %s27, %s28
      %p32 = pneg %p26
      %p33 = scmp.eq.s32.totalorder %s17, 1
      %p34 = por %p32, %p33
      %p35 = scmp.ne.s32.totalorder %s27, %s30
      %p36 = scmp.eq.s32.totalorder %s17, 0
      %p37 = por %p35, %p36
      %p38 = scmp.ne.s32.totalorder %s27, %s30
      %p39 = scmp.eq.s32.totalorder %s22, 1
      %p40 = por %p38, %p39
      %p41 = scmp.ne.s32.totalorder %s30, %s31
      %p42 = scmp.eq.s32.totalorder %s22, 0
      %p43 = por %p41, %p42
      %p44 = scmp.ne.s32.totalorder %s30, %s31
      %p45 = scmp.eq.s32.totalorder %s23, 1
      %p46 = por %p44, %p45
      %p48 = scmp.ne.s32.totalorder %s31, %s47
      %p49 = scmp.eq.s32.totalorder %s23, 0
      %p50 = por %p48, %p49
      %s52 = sadd.s32 %s51, 1
      %p55 = scmp.eq.s32.totalorder %s17, 1
      %p56 = scmp.ne.s32.totalorder %s51, %s53
      %p57 = scmp.eq.s32.totalorder %s17, 0
      %p58 = por %p56, %p57
      %p59 = scmp.ne.s32.totalorder %s51, %s53
      %p60 = scmp.eq.s32.totalorder %s22, 1
      %p61 = por %p59, %p60
      %p62 = scmp.ne.s32.totalorder %s53, %s54
      %p63 = scmp.eq.s32.totalorder %s22, 0
      %p64 = por %p62, %p63
      %p65 = scmp.ne.s32.totalorder %s53, %s54
      %p66 = scmp.eq.s32.totalorder %s23, 1
      %p67 = por %p65, %p66
      %p69 = scmp.ne.s32.totalorder %s54, %s68
      %p70 = scmp.eq.s32.totalorder %s23, 0
      %p71 = por %p69, %p70
      %s73 = sadd.s32 %s72, 1
      %p76 = scmp.eq.s32.totalorder %s17, 1
      %p77 = scmp.ne.s32.totalorder %s72, %s74
      %p78 = scmp.eq.s32.totalorder %s17, 0
      %p79 = por %p77, %p78
      %p80 = scmp.ne.s32.totalorder %s72, %s74
      %p81 = scmp.eq.s32.totalorder %s22, 1
      %p82 = por %p80, %p81
      %p83 = scmp.ne.s32.totalorder %s74, %s75
      %p84 = scmp.eq.s32.totalorder %s22, 0
      %p85 = por %p83, %p84
      %p86 = scmp.ne.s32.totalorder %s74, %s75
      %p87 = scmp.eq.s32.totalorder %s23, 1
      %p88 = por %p86, %p87
      %p90 = scmp.ne.s32.totalorder %s75, %s89
      %p91 = scmp.eq.s32.totalorder %s23, 0
      %p92 = por %p90, %p91
      %s94 = sadd.s32 %s93, 1
      %p97 = scmp.eq.s32.totalorder %s17, 1
      %p98 = scmp.ne.s32.totalorder %s93, %s95
      %p99 = scmp.eq.s32.totalorder %s17, 0
      %p100 = por %p98, %p99
      %p101 = scmp.ne.s32.totalorder %s93, %s95
      %p102 = scmp.eq.s32.totalorder %s22, 1
      %p103 = por %p101, %p102
      %p104 = scmp.ne.s32.totalorder %s95, %s96
      %p105 = scmp.eq.s32.totalorder %s22, 0
      %p106 = por %p104, %p105
      %p107 = scmp.ne.s32.totalorder %s95, %s96
      %p108 = scmp.eq.s32.totalorder %s23, 1
      %p109 = por %p107, %p108
      %p111 = scmp.ne.s32.totalorder %s96, %s110
      %p112 = scmp.eq.s32.totalorder %s23, 0
      %p113 = por %p111, %p112
      %s115 = sadd.s32 %s114, 1
      %p118 = scmp.eq.s32.totalorder %s17, 1
      %p119 = scmp.ne.s32.totalorder %s114, %s116
      %p120 = scmp.eq.s32.totalorder %s17, 0
      %p121 = por %p119, %p120
      %p122 = scmp.ne.s32.totalorder %s114, %s116
      %p123 = scmp.eq.s32.totalorder %s22, 1
      %p124 = por %p122, %p123
      %p125 = scmp.ne.s32.totalorder %s116, %s117
      %p126 = scmp.eq.s32.totalorder %s22, 0
      %p127 = por %p125, %p126
      %p128 = scmp.ne.s32.totalorder %s116, %s117
      %p129 = scmp.eq.s32.totalorder %s23, 1
      %p130 = por %p128, %p129
      %p132 = scmp.ne.s32.totalorder %s117, %s131
      %p133 = scmp.eq.s32.totalorder %s23, 0
      %p134 = por %p132, %p133
      %s135 = ssub.s32 %s17, %s24
      %p136 = scmp.eq.s32.totalorder %s135, 0
      %s138 = sadd.s32 %s137, 1
      %s139 = scalar_select %p136, %s137, %s138
      %p142 = pneg %p136
      %p143 = scmp.eq.s32.totalorder %s17, 1
      %p144 = por %p142, %p143
      %p145 = scmp.ne.s32.totalorder %s137, %s140
      %p146 = scmp.eq.s32.totalorder %s17, 0
      %p147 = por %p145, %p146
      %p148 = scmp.ne.s32.totalorder %s137, %s140
      %p149 = scmp.eq.s32.totalorder %s22, 1
      %p150 = por %p148, %p149
      %p151 = scmp.ne.s32.totalorder %s140, %s141
      %p152 = scmp.eq.s32.totalorder %s22, 0
      %p153 = por %p151, %p152
      %p154 = scmp.ne.s32.totalorder %s140, %s141
      %p155 = scmp.eq.s32.totalorder %s23, 1
      %p156 = por %p154, %p155
      %p158 = scmp.ne.s32.totalorder %s141, %s157
      %p159 = scmp.eq.s32.totalorder %s23, 0
      %p160 = por %p158, %p159
      %p161 = scmp.le.s32.totalorder 1, %s17
      %p162 = scmp.lt.s32.totalorder %s17, 3
      %p163 = pnand %p161, %p162
      %p164 = pneg %p163
      // Predicated region
      $region9: #{tpu_custom_call.1} parent=5 // pred_check
        _
      $region10: #{tpu_custom_call.1} parent=5 // pred_check_branch
        %166 = sbr.rel (%p163) target = $region12
      $region11: #{tpu_custom_call.1} parent=5 // pred_region
        %s167 = ssub.s32 %s17, 1
        // Predicated region
        $region13: #{tpu_custom_call.1} parent=11 // pred_check
          %p168 = pneg %p64
        $region14: #{tpu_custom_call.1} parent=11 // pred_check_branch
          %170 = sbr.rel (%p168) target = $region16
        $region15: #{tpu_custom_call.1} parent=11 // pred_region
          _
        $region16: #{tpu_custom_call.1} parent=11 // pred_fallthru
          _
        // Predicated region
        $region17: #{tpu_custom_call.1} parent=11 // pred_check
          %p171 = pneg %p85
        $region18: #{tpu_custom_call.1} parent=11 // pred_check_branch
          %173 = sbr.rel (%p171) target = $region20
        $region19: #{tpu_custom_call.1} parent=11 // pred_region
          _
        $region20: #{tpu_custom_call.1} parent=11 // pred_fallthru
          _
        // Predicated region
        $region21: #{tpu_custom_call.1} parent=11 // pred_check
          %p174 = pneg %p106
        $region22: #{tpu_custom_call.1} parent=11 // pred_check_branch
          %176 = sbr.rel (%p174) target = $region24
        $region23: #{tpu_custom_call.1} parent=11 // pred_region
          _
        $region24: #{tpu_custom_call.1} parent=11 // pred_fallthru
          _
        // Predicated region
        $region25: #{tpu_custom_call.1} parent=11 // pred_check
          %p177 = pneg %p127
        $region26: #{tpu_custom_call.1} parent=11 // pred_check_branch
          %179 = sbr.rel (%p177) target = $region28
        $region27: #{tpu_custom_call.1} parent=11 // pred_region
          _
        $region28: #{tpu_custom_call.1} parent=11 // pred_fallthru
          _
      $region12: #{tpu_custom_call.1} parent=5 // pred_fallthru
        _
      %p180 = scmp.lt.s32.totalorder %s17, 2
      // Predicated region
      $region29: #{tpu_custom_call.1} parent=5 // pred_check
        %p181 = pneg %p180
      $region30: #{tpu_custom_call.1} parent=5 // pred_check_branch
        %183 = sbr.rel (%p181) target = $region32
      $region31: #{tpu_custom_call.1} parent=5 // pred_region
        // Predicated region
        $region33: #{tpu_custom_call.1} parent=31 // pred_check
          %p184 = pneg %p37
        $region34: #{tpu_custom_call.1} parent=31 // pred_check_branch
          %186 = sbr.rel (%p184) target = $region36
        $region35: #{tpu_custom_call.1} parent=31 // pred_region
          %s187 = sand.u32 %s27, 1
          %s188 = scalar_lea.sflag [#allocation3], %s187
          %s189 = sand.u32 %s27, 1
          %s190 = smul.addr %s189, 32
          %s191 = scalar_lea.vmem [#allocation2], %s190
          %s193 = ssub.s32 512, 512
          %194 = vsyncadd %s188, %s193
          %s195 = smul.addr %s17, 128
          %s196 = scalar_lea.hbm %s0, %s195
          %s197 = sshll.u32 %s191, 4
          %s198 = int_to_ptr.vmem [resolvable:$true] %s197
          %203 = dma.hbm_to_vmem [thread:$0]  %s196, 512, %s198, %s188, 256, 128, 8
        $region36: #{tpu_custom_call.1} parent=31 // pred_fallthru
          _
      $region32: #{tpu_custom_call.1} parent=5 // pred_fallthru
        _
      %p204 = scmp.le.s32.totalorder 1, %s17
      %p205 = scmp.lt.s32.totalorder %s17, 3
      %p206 = pnand %p204, %p205
      %p207 = pneg %p206
      // Predicated region
      $region37: #{tpu_custom_call.1} parent=5 // pred_check
        _
      $region38: #{tpu_custom_call.1} parent=5 // pred_check_branch
        %209 = sbr.rel (%p206) target = $region40
      $region39: #{tpu_custom_call.1} parent=5 // pred_region
        %s210 = ssub.s32 %s17, 1
        %s211 = sand.u32 %s30, 1
        %s212 = scalar_lea.sflag [#allocation3], %s211
        %s213 = sand.u32 %s30, 1
        %s214 = smul.addr %s213, 32
        %s215 = scalar_lea.vmem [#allocation2], %s214
        // Predicated region
        $region41: #{tpu_custom_call.1} parent=39 // pred_check
          %p216 = pneg %p43
        $region42: #{tpu_custom_call.1} parent=39 // pred_check_branch
          %218 = sbr.rel (%p216) target = $region44
        $region43: #{tpu_custom_call.1} parent=39 // pred_region
          %219 = dma.done %s212, 512
        $region44: #{tpu_custom_call.1} parent=39 // pred_fallthru
          _
        %s220 = sand.u32 %s30, 1
        %s221 = scalar_lea.sflag [#allocation3], %s220
        %s222 = sand.u32 %s30, 1
        %s223 = smul.addr %s222, 32
        %s224 = scalar_lea.vmem [#allocation2], %s223
        %p225 = pneg %p43
        %p226 = pneg %p40
        %p227 = pneg %p64
        %p228 = pneg %p61
        %p229 = pneg %p85
        %p230 = pneg %p82
        %p231 = pneg %p106
        %p232 = pneg %p103
        %p233 = pneg %p127
        %p234 = pneg %p124
        %p235 = pneg %p153
        %p236 = pneg %p150
        %s237 = sand.u32 %s140, 1
        %s238 = scalar_lea.sflag [#allocation4], %s237
        %s239 = sand.u32 %s140, 1
        %s240 = smul.addr %s239, 16
        %s241 = scalar_lea.vmem [#allocation5], %s240
        %v242 = vld [vmem:[%s215] sm:$0xff]
        %v243 = vld [vmem:[%s215 + $0x8] sm:$0xff]
        %v244 = vld [vmem:[%s215 + $0x10] sm:$0xff]
        %v245 = vld [vmem:[%s215 + $0x18] sm:$0xff]
        %v246 = vld [vmem:[%s1] sm:$0xff]
        %v247 = vld [vmem:[%s1 + $0x8] sm:$0xff]
        %v248 = vld [vmem:[%s1 + $0x10] sm:$0xff]
        %v249 = vld [vmem:[%s1 + $0x18] sm:$0xff]
        %v250 = vld [vmem:[%s2] sm:$0xff]
        %v251 = vld [vmem:[%s2 + $0x8] sm:$0xff]
        %v252 = vld [vmem:[%s2 + $0x10] sm:$0xff]
        %v253 = vld [vmem:[%s2 + $0x18] sm:$0xff]
        %255 = vset.pattern.permute.xlu0 0
        %256 = vperm.xlu0 %255, %v250
        %v257 = vpop.permute.xlu0 %256
        %260 = vset.pattern.permute.xlu0 0
        %261 = vperm.xlu0 %260, %v251
        %v262 = vpop.permute.xlu0 %261
        %265 = vset.pattern.permute.xlu0 0
        %266 = vperm.xlu0 %265, %v252
        %v267 = vpop.permute.xlu0 %266
        %270 = vset.pattern.permute.xlu0 0
        %271 = vperm.xlu0 %270, %v253
        %v272 = vpop.permute.xlu0 %271
        %vm274 = vcmask 261120
        %v276 = vsel %vm274, %v246, 0
        %v279 = vsel %vm274, %v247, 0
        %v282 = vsel %vm274, %v248, 0
        %v285 = vsel %vm274, %v249, 0
        %287 = vmatprep.subr.mxu0 0.0
        %288 = vmatpush1.msra.mxu0 0.0
        %289 = vmatprep.subr.mxu0 0.0
        %290 = vmatpush1.msra.mxu0 0.0
        %291 = vmatprep.subr.mxu0 0.0
        %292 = vmatpush1.msra.mxu0 0.0
        %293 = vmatprep.subr.mxu0 0.0
        %294 = vmatpush1.msra.mxu0 0.0
        %295 = vmatprep.subr.mxu0 0.0
        %296 = vmatpush1.msra.mxu0 0.0
        %297 = vmatprep.subr.mxu0 0.0
        %298 = vmatpush1.msra.mxu0 0.0
        %299 = vmatprep.subr.mxu0 0.0
        %300 = vmatpush1.msra.mxu0 0.0
        %301 = vmatprep.subr.mxu0 0.0
        %302 = vmatpush1.msra.mxu0 0.0
        %303 = vmatprep.subr.mxu0 0.0
        %304 = vmatpush1.msra.mxu0 0.0
        %305 = vmatprep.subr.mxu0 0.0
        %306 = vmatpush1.msra.mxu0 0.0
        %307 = vmatprep.subr.mxu0 0.0
        %308 = vmatpush1.msra.mxu0 0.0
        %309 = vmatprep.subr.mxu0 0.0
        %310 = vmatpush1.msra.mxu0 0.0
        %311 = vmatprep.subr.mxu0 0.0
        %312 = vmatpush1.msra.mxu0 %v245
        %313 = vmatprep.subr.mxu0 0.0
        %314 = vmatpush1.msra.mxu0 %v244
        %315 = vmatprep.subr.mxu0 0.0
        %316 = vmatpush1.msra.mxu0 %v243
        %317 = vmatprep.subr.mxu0 0.0
        %318 = vmatpush1.msra.mxu0 %v242
        %319 = vmatprep.subr.mxu0 0.0
        %320 = vmatpush2.msra.mxu0 0.0
        %321 = vmatprep.subr.mxu0 0.0
        %322 = vmatpush2.msra.mxu0 0.0
        %323 = vmatprep.subr.mxu0 0.0
        %324 = vmatpush2.msra.mxu0 0.0
        %325 = vmatprep.subr.mxu0 0.0
        %326 = vmatpush2.msra.mxu0 0.0
        %327 = vmatprep.subr.mxu0 0.0
        %328 = vmatpush2.msra.mxu0 0.0
        %329 = vmatprep.subr.mxu0 0.0
        %330 = vmatpush2.msra.mxu0 0.0
        %331 = vmatprep.subr.mxu0 0.0
        %332 = vmatpush2.msra.mxu0 0.0
        %333 = vmatprep.subr.mxu0 0.0
        %334 = vmatpush2.msra.mxu0 0.0
        %335 = vmatprep.subr.mxu0 0.0
        %336 = vmatpush2.msra.mxu0 0.0
        %337 = vmatprep.subr.mxu0 0.0
        %338 = vmatpush2.msra.mxu0 0.0
        %339 = vmatprep.subr.mxu0 0.0
        %340 = vmatpush2.msra.mxu0 0.0
        %341 = vmatprep.subr.mxu0 0.0
        %342 = vmatpush2.msra.mxu0 0.0
        %343 = vmatprep.subr.mxu0 0.0
        %344 = vmatpush2.msra.mxu0 0.0
        %345 = vmatprep.subr.mxu0 0.0
        %346 = vmatpush2.msra.mxu0 0.0
        %347 = vmatprep.subr.mxu0 0.0
        %348 = vmatpush2.msra.mxu0 0.0
        %349 = vmatprep.subr.mxu0 0.0
        %350 = vmatpush2.msra.mxu0 0.0
        %351 = vmatprep.mubr.f32.mxu0 0.0
        %352 = vmatmul.mubr.f32.gmra.mxu0 %v276
        %v353 = vpop.f32.mrf.mxu0
        %v354 = vadd.f32 %v257, %v353
        %v355 = vpop.f32.mrf.mxu0
        %356 = vmatprep.mubr.f32.mxu0 0.0
        %357 = vmatmul.mubr.f32.gmra.mxu0 %v279
        %v358 = vpop.f32.mrf.mxu0
        %v359 = vadd.f32 %v262, %v358
        %v360 = vpop.f32.mrf.mxu0
        %361 = vmatprep.mubr.f32.mxu0 0.0
        %362 = vmatmul.mubr.f32.gmra.mxu0 %v282
        %v363 = vpop.f32.mrf.mxu0
        %v364 = vadd.f32 %v267, %v363
        %v365 = vpop.f32.mrf.mxu0
        %366 = vmatprep.mubr.f32.mxu0 0.0
        %367 = vmatmul.mubr.f32.gmra.mxu0 %v285
        %v368 = vpop.f32.mrf.mxu0
        %v369 = vadd.f32 %v272, %v368
        %v370 = vpop.f32.mrf.mxu0
        %371 = vdwg.mxu0
        %v372 = vmax.f32 %v354, 0.0
        %v373 = vmax.f32 %v359, 0.0
        %v374 = vmax.f32 %v364, 0.0
        %v375 = vmax.f32 %v369, 0.0
        %v376 = vld [vmem:[%s3] sm:$0xff]
        %v377 = vld [vmem:[%s3 + $0x8] sm:$0xff]
        %v378 = vld [vmem:[%s4] sm:$0xff]
        %v379 = vld [vmem:[%s4 + $0x8] sm:$0xff]
        %381 = vset.pattern.permute.xlu0 0
        %382 = vperm.xlu0 %381, %v378
        %v383 = vpop.permute.xlu0 %382
        %386 = vset.pattern.permute.xlu0 0
        %387 = vperm.xlu0 %386, %v379
        %v388 = vpop.permute.xlu0 %387
        %v391 = vsel %vm274, %v376, 0
        %v394 = vsel %vm274, %v377, 0
        %396 = vmatprep.subr.mxu0 0.0
        %397 = vmatpush1.msra.mxu0 0.0
        %398 = vmatprep.subr.mxu0 0.0
        %399 = vmatpush1.msra.mxu0 0.0
        %400 = vmatprep.subr.mxu0 0.0
        %401 = vmatpush1.msra.mxu0 0.0
        %402 = vmatprep.subr.mxu0 0.0
        %403 = vmatpush1.msra.mxu0 0.0
        %404 = vmatprep.subr.mxu0 0.0
        %405 = vmatpush1.msra.mxu0 0.0
        %406 = vmatprep.subr.mxu0 0.0
        %407 = vmatpush1.msra.mxu0 0.0
        %408 = vmatprep.subr.mxu0 0.0
        %409 = vmatpush1.msra.mxu0 0.0
        %410 = vmatprep.subr.mxu0 0.0
        %411 = vmatpush1.msra.mxu0 0.0
        %412 = vmatprep.subr.mxu0 0.0
        %413 = vmatpush1.msra.mxu0 0.0
        %414 = vmatprep.subr.mxu0 0.0
        %415 = vmatpush1.msra.mxu0 0.0
        %416 = vmatprep.subr.mxu0 0.0
        %417 = vmatpush1.msra.mxu0 0.0
        %418 = vmatprep.subr.mxu0 0.0
        %419 = vmatpush1.msra.mxu0 0.0
        %420 = vmatprep.subr.mxu0 0.0
        %421 = vmatpush1.msra.mxu0 %v375
        %422 = vmatprep.subr.mxu0 0.0
        %423 = vmatpush1.msra.mxu0 %v374
        %424 = vmatprep.subr.mxu0 0.0
        %425 = vmatpush1.msra.mxu0 %v373
        %426 = vmatprep.subr.mxu0 0.0
        %427 = vmatpush1.msra.mxu0 %v372
        %428 = vmatprep.subr.mxu0 0.0
        %429 = vmatpush2.msra.mxu0 0.0
        %430 = vmatprep.subr.mxu0 0.0
        %431 = vmatpush2.msra.mxu0 0.0
        %432 = vmatprep.subr.mxu0 0.0
        %433 = vmatpush2.msra.mxu0 0.0
        %434 = vmatprep.subr.mxu0 0.0
        %435 = vmatpush2.msra.mxu0 0.0
        %436 = vmatprep.subr.mxu0 0.0
        %437 = vmatpush2.msra.mxu0 0.0
        %438 = vmatprep.subr.mxu0 0.0
        %439 = vmatpush2.msra.mxu0 0.0
        %440 = vmatprep.subr.mxu0 0.0
        %441 = vmatpush2.msra.mxu0 0.0
        %442 = vmatprep.subr.mxu0 0.0
        %443 = vmatpush2.msra.mxu0 0.0
        %444 = vmatprep.subr.mxu0 0.0
        %445 = vmatpush2.msra.mxu0 0.0
        %446 = vmatprep.subr.mxu0 0.0
        %447 = vmatpush2.msra.mxu0 0.0
        %448 = vmatprep.subr.mxu0 0.0
        %449 = vmatpush2.msra.mxu0 0.0
        %450 = vmatprep.subr.mxu0 0.0
        %451 = vmatpush2.msra.mxu0 0.0
        %452 = vmatprep.subr.mxu0 0.0
        %453 = vmatpush2.msra.mxu0 0.0
        %454 = vmatprep.subr.mxu0 0.0
        %455 = vmatpush2.msra.mxu0 0.0
        %456 = vmatprep.subr.mxu0 0.0
        %457 = vmatpush2.msra.mxu0 0.0
        %458 = vmatprep.subr.mxu0 0.0
        %459 = vmatpush2.msra.mxu0 0.0
        %460 = vmatprep.mubr.f32.mxu0 0.0
        %461 = vmatmul.mubr.f32.gmra.mxu0 %v391
        %v462 = vpop.f32.mrf.mxu0
        %v463 = vadd.f32 %v383, %v462
        %v464 = vpop.f32.mrf.mxu0
        %465 = vmatprep.mubr.f32.mxu0 0.0
        %466 = vmatmul.mubr.f32.gmra.mxu0 %v394
        %v467 = vpop.f32.mrf.mxu0
        %v468 = vadd.f32 %v388, %v467
        %v469 = vpop.f32.mrf.mxu0
        %470 = vdwg.mxu0
        %v471 = vlaneseq
        %v472 = vshrl.u32 %v471, 7
        %v473 = vadd.s32 %v472, 8
        %v474 = vmax.f32 %v463, -20.0
        %v475 = vmax.f32 %v468, -20.0
        %v476 = vmin.f32 %v474, 2.0
        %v477 = vmin.f32 %v475, 2.0
        %v478 = vmul.f32 %v476, 1.442695
        %v479 = vpow.pop %v478
        %v480 = vmul.f32 %v477, 1.442695
        %v481 = vpow.pop %v480
        %vm482 = vcmp.ge.s32.totalorder %v472, 8
        %vm483 = vcmp.ge.s32.totalorder %v473, 8
        %v484 = vsel %vm482, %v479, %v463
        %v485 = vsel %vm483, %v481, %v468
        %486 = vst [vmem:[%s241] sm:$0xff] %v484
        %487 = vst [vmem:[%s241 + $0x8] sm:$0xff] %v485
        %s488 = sand.u32 %s140, 1
        %s489 = scalar_lea.sflag [#allocation4], %s488
        %s490 = sand.u32 %s140, 1
        %s491 = smul.addr %s490, 16
        %s492 = scalar_lea.vmem [#allocation5], %s491
        // Predicated region
        $region45: #{tpu_custom_call.1} parent=39 // pred_check
          %p493 = pneg %p150
        $region46: #{tpu_custom_call.1} parent=39 // pred_check_branch
          %495 = sbr.rel (%p493) target = $region48
        $region47: #{tpu_custom_call.1} parent=39 // pred_region
          %s497 = ssub.s32 256, 256
          %498 = vsyncadd %s489, %s497
          %s499 = smul.addr %s22, 128
          %s500 = scalar_lea.hbm %s5, %s499
          %s501 = sshll.u32 %s492, 4
          %s502 = int_to_ptr.vmem [resolvable:$true] %s501
          %507 = dma.vmem_to_hbm [thread:$0]  %s502, 256, %s500, %s489, 128, 256, 8
        $region48: #{tpu_custom_call.1} parent=39 // pred_fallthru
          _
      $region40: #{tpu_custom_call.1} parent=5 // pred_fallthru
        _
      %p508 = scmp.le.s32.totalorder 2, %s17
      // Predicated region
      $region49: #{tpu_custom_call.1} parent=5 // pred_check
        %p509 = pneg %p508
      $region50: #{tpu_custom_call.1} parent=5 // pred_check_branch
        %511 = sbr.rel (%p509) target = $region52
      $region51: #{tpu_custom_call.1} parent=5 // pred_region
        %s512 = ssub.s32 %s17, 2
        // Predicated region
        $region53: #{tpu_custom_call.1} parent=51 // pred_check
          %p513 = pneg %p156
        $region54: #{tpu_custom_call.1} parent=51 // pred_check_branch
          %515 = sbr.rel (%p513) target = $region56
        $region55: #{tpu_custom_call.1} parent=51 // pred_region
          %s516 = sand.u32 %s141, 1
          %s517 = scalar_lea.sflag [#allocation4], %s516
          %s518 = sand.u32 %s141, 1
          %s519 = smul.addr %s518, 16
          %s520 = scalar_lea.vmem [#allocation5], %s519
          %521 = dma.done %s517, 256
        $region56: #{tpu_custom_call.1} parent=51 // pred_fallthru
          _
      $region52: #{tpu_custom_call.1} parent=5 // pred_fallthru
        _
    $region6: #{tpu_custom_call.1} parent=1 // loop_footer
      %s21 = sadd.s32 1, %s17
    $region7: #{tpu_custom_call.1} parent=1 // loop_footer_branch
      %16 = sbr.rel target = $region3
    $region8: #{tpu_custom_call.1} parent=1 // loop_exit
      _
    %522 = vsyncpa [#allocation3], 1
    %s523 = scalar_lea.sflag [#allocation3], 1
    %524 = vsyncpa %s523, 1
    %525 = vsyncpa [#allocation4], 1
    %s526 = scalar_lea.sflag [#allocation4], 1
    %527 = vsyncpa %s526, 1

</llo_original>
